<compile_context>
chip_gen: v7x
topology: tpu7x:2x2x1
jax: 0.10.0
libtpu: 0.0.40
codegen_flags: <defaults>
</compile_context>

<pallas_src>
import functools

import jax
import jax.numpy as jnp
from jax.experimental import pallas as pl
from jax.experimental.pallas import tpu as pltpu

_LANE = 128
_MIB = 1024 * 1024
_MXU_MAX_C = 64  # below this, use the MXU selection-matrix reduction


def _round_up(v, m):
    return ((v + m - 1) // m) * m


def _sublane_pack(itemsize):
    # Packed sublane count per dtype width: f32 -> 8, bf16 -> 16, int8/fp8 -> 32.
    return {4: 8, 2: 16, 1: 32}.get(itemsize, 8)


def _vmem_budget():
    """Returns (per-step HBM-traffic target bytes, physical VMEM bytes)."""
    phys = 128 * _MIB
    try:
        phys = int(pltpu.get_tpu_info().vmem_capacity_bytes)
    except Exception:
        pass
    kind = ""
    try:
        kind = jax.devices()[0].device_kind.lower()
    except Exception:
        pass
    if ("v5 lite" in kind) or ("v5e" in kind) or ("v5lite" in kind):
        # v5e: ~0.82 TB/s HBM -> per-step overhead is already small at ~4 MiB,
        # and the scoped-VMEM default is only 16 MiB, so stay conservative.
        target = 4 * _MIB
    else:
        # v6e / v7x: ~0.35 us/step overhead vs 1.4/3.2 TB/s HBM -> ~8 MiB
        # steps keep the grid overhead below ~10% of wall time.
        target = 8 * _MIB
    return target, phys


def _avg_kernel_mxu(x_ref, w_ref, o_ref, *, inv_k):
    # x_ref: (tl, k*C); w_ref: (k*C, C) 0/1 selection matrix.
    # A single MXU matmul gathers + sums the k window elements per channel
    # (exact f32 accumulation: W entries are 1.0); scale once by 1/k.
    acc = jnp.dot(
        x_ref[...],
        w_ref[...],
        preferred_element_type=jnp.float32,
        precision=jax.lax.Precision.HIGHEST,
    )
    o_ref[...] = (acc * inv_k).astype(o_ref.dtype)


def _avg_kernel_vpu(x_ref, o_ref, *, k, c, inv_k):
    # x_ref: (tl, k*C) with C >= 64: k-1 unrolled lane-slice VPU adds
    # (aligned when 128 | C), f32 accumulation, single 1/k scale.
    acc = x_ref[:, 0:c].astype(jnp.float32)
    for j in range(1, k):
        acc = acc + x_ref[:, j * c:(j + 1) * c].astype(jnp.float32)
    o_ref[...] = (acc * inv_k).astype(o_ref.dtype)


def moving_avg(x, kernel_size, *, target_block_bytes=None):
    """Non-overlapping window mean over the time axis.

    x: (B, L, C) -> (B, L // kernel_size, C)   (= AvgPool1d(k, stride=k, pad=0))
    """
    B, L, C = x.shape
    k = int(kernel_size)
    Lout = L // k
    if Lout == 0:
        return jnp.zeros((B, 0, C), dtype=x.dtype)
    if k == 1:
        return x

    itemsize = jnp.dtype(x.dtype).itemsize
    pack = _sublane_pack(itemsize)

    # Fold the k-window into the lane dim and merge (B, Lout) into one flat
    # row axis R.  Free reshape when k | L; otherwise one truncation copy
    # (cheaper than a lane-sparse strided fallback kernel).
    if L % k != 0:
        x = x[:, : Lout * k, :]
    R = B * Lout
    x_fold = x.reshape(R, k * C)

    # ---- block sizing (generation-aware) -----------------------------------
    target, phys = _vmem_budget()
    if target_block_bytes is not None:
        target = int(target_block_bytes)
    # True HBM bytes per output row vs VMEM-resident bytes (lanes pad to 128).
    hbm_row = (k * C + C) * itemsize
    vmem_row = (_round_up(k * C, _LANE) + _round_up(C, _LANE)) * itemsize
    # Per-copy VMEM cap: double-buffered (in+out) must stay well under
    # physical VMEM (v7x: 64 MiB per TensorCore) -> cap one copy at phys/8.
    vmem_cap = phys // 8
    tl = max(pack, min(target // hbm_row, vmem_cap // vmem_row))
    if tl >= R:
        tl = R                                      # single full-dim block
    else:
        tl = max(pack, (tl // pack) * pack)         # respect (8,128)/packing rule
    num_tiles = pl.cdiv(R, tl)

    use_mxu = C < _MXU_MAX_C
    w_bytes = (k * C) * C * itemsize if use_mxu else 0
    footprint = 2 * tl * vmem_row + 2 * w_bytes + 2 * _MIB
    vmem_limit = int(min(max(32 * _MIB, footprint), int(0.9 * phys)))

    x_spec = pl.BlockSpec((tl, k * C), lambda i: (i, 0))
    out_spec = pl.BlockSpec((tl, C), lambda i: (i, 0))

    flops = (2 * R * (k * C) * C) if use_mxu else (R * C * k)
    cost = pl.CostEstimate(
        flops=flops,
        transcendentals=0,
        bytes_accessed=(R * k * C + R * C) * itemsize + w_bytes,
    )
    params = pltpu.CompilerParams(
        dimension_semantics=("parallel",),  # flat grid -> megacore sharding on v7x
        vmem_limit_bytes=vmem_limit,
    )

    if use_mxu:
        # Tiny 0/1 selection matrix: W[j*C + c', c] = (c' == c).
        w = (jnp.arange(k * C)[:, None] % C == jnp.arange(C)[None, :]).astype(x.dtype)
        w_spec = pl.BlockSpec((k * C, C), lambda i: (0, 0))
        out_flat = pl.pallas_call(
            functools.partial(_avg_kernel_mxu, inv_k=1.0 / k),
            out_shape=jax.ShapeDtypeStruct((R, C), x.dtype),
            grid=(num_tiles,),
            in_specs=[x_spec, w_spec],
            out_specs=out_spec,
            compiler_params=params,
            cost_estimate=cost,
        )(x_fold, w)
    else:
        out_flat = pl.pallas_call(
            functools.partial(_avg_kernel_vpu, k=k, c=C, inv_k=1.0 / k),
            out_shape=jax.ShapeDtypeStruct((R, C), x.dtype),
            grid=(num_tiles,),
            in_specs=[x_spec],
            out_specs=out_spec,
            compiler_params=params,
            cost_estimate=cost,
        )(x_fold)

    return out_flat.reshape(B, Lout, C)


if __name__ == "__main__":
    key = jax.random.PRNGKey(0)

    def ref_moving_avg(xr, k):
        Br, Lr, Cr = xr.shape
        Lo = Lr // k
        xt = xr[:, : Lo * k, :].astype(jnp.float32).reshape(Br, Lo, k, Cr)
        return jnp.mean(xt, axis=2).astype(xr.dtype)

    # (B, L, C, k, dtype, target_block_bytes override, atol)
    checks = [
        (2, 16, 8, 4, jnp.float32, None, 1e-5),        # demo shape, MXU path
        (2, 19, 7, 3, jnp.float32, None, 1e-5),        # L % k != 0 (truncation path)
        (2, 72, 256, 4, jnp.float32, 64 * 1024, 1e-5),  # VPU path, multi-tile + ragged edge tile
        (2, 24, 8, 4, jnp.bfloat16, None, 2e-2),       # bf16 (packed-sublane rounding)
    ]
    for idx, (B, L, C, k, dtype, tbb, atol) in enumerate(checks):
        key, sub = jax.random.split(key)
        x = jax.random.normal(sub, (B, L, C), dtype=jnp.float32).astype(dtype)
        out = jax.block_until_ready(moving_avg(x, k, target_block_bytes=tbb))
        ref = ref_moving_avg(x, k)
        assert out.shape == ref.shape, (idx, out.shape, ref.shape)
        assert jnp.allclose(
            out.astype(jnp.float32), ref.astype(jnp.float32), atol=atol, rtol=atol
        ), f"mismatch vs reference in check {idx}"

    print("KERNEL_OK")
</pallas_src>

<mosaic_0001>
module attributes {stable_mosaic.version = 11 : i64} {
  func.func @_avg_kernel_mxu(%arg0: i32, %arg1: memref<8x32xf32, #tpu.memory_space<vmem>>, %arg2: memref<32x8xf32, #tpu.memory_space<vmem>>, %arg3: memref<8x8xf32, #tpu.memory_space<vmem>>) attributes {dimension_semantics = [#tpu.dimension_semantics<parallel>], iteration_bounds = array<i64: 1>, scalar_prefetch = 0 : i64, scratch_operands = 0 : i64, tpu.core_type = #tpu.core_type<tc>, window_params = [{transform_indices = @transform_0, window_bounds = array<i64: 8, 32>}, {pipeline_mode = #tpu.pipeline_mode<synchronous>, transform_indices = @transform_1, window_bounds = array<i64: 32, 8>}, {transform_indices = @transform_2, window_bounds = array<i64: 8, 8>}]} {
    %c0 = arith.constant 0 : index
    %c0_0 = arith.constant 0 : index
    %0 = vector.load %arg1[%c0, %c0_0] : memref<8x32xf32, #tpu.memory_space<vmem>>, vector<8x32xf32>
    %c0_1 = arith.constant 0 : index
    %c0_2 = arith.constant 0 : index
    %1 = vector.load %arg2[%c0_1, %c0_2] : memref<32x8xf32, #tpu.memory_space<vmem>>, vector<32x8xf32>
    %cst = arith.constant dense<0.000000e+00> : vector<8x8xf32>
    %2 = tpu.matmul %0, %1, %cst {dimension_numbers = #tpu.dot_dimension_numbers<[1], [0], [0], [1], [0, 0, 1, 1], [], []>, precision = #tpu.contract_precision<fp32>} : vector<8x32xf32>, vector<32x8xf32>, vector<8x8xf32> -> vector<8x8xf32>
    %cst_3 = arith.constant 2.500000e-01 : f32
    %3 = vector.broadcast %cst_3 : f32 to vector<8x8xf32>
    %4 = arith.mulf %2, %3 : vector<8x8xf32>
    %c0_4 = arith.constant 0 : index
    %c0_5 = arith.constant 0 : index
    %5 = vector.load %arg3[%c0_4, %c0_5] : memref<8x8xf32, #tpu.memory_space<vmem>>, vector<8x8xf32>
    tpu.vector_store %arg3[%c0_4, %c0_5], %4 {strides = array<i32>} : memref<8x8xf32, #tpu.memory_space<vmem>>, vector<8x8xf32>,
    return
  }
  func.func @transform_0(%arg0: i32) -> (i32, i32) {
    %c0_i32 = arith.constant 0 : i32
    %c0_i32_0 = arith.constant 0 : i32
    return %arg0, %c0_i32 : i32, i32
  }
  func.func @transform_1(%arg0: i32) -> (i32, i32) {
    %c0_i32 = arith.constant 0 : i32
    %c0_i32_0 = arith.constant 0 : i32
    %c0_i32_1 = arith.constant 0 : i32
    return %c0_i32, %c0_i32_0 : i32, i32
  }
  func.func @transform_2(%arg0: i32) -> (i32, i32) {
    %c0_i32 = arith.constant 0 : i32
    %c0_i32_0 = arith.constant 0 : i32
    return %arg0, %c0_i32 : i32, i32
  }
}

</mosaic_0001>

<llo_original>
// kernel: tpu_custom_call.1
$region0: #{tpu_custom_call.1}
  #allocation0 [shape = 'u32[]', space=smem, size = 0x4, offset = 0x4, fixed_abs, tag = 'smem constant byte address 0x4 - core index']
  #allocation1 [shape = 'u32[144,128]{1,0:T(1,128)}', space=vmem, size = 0x12000, scoped, tag = 'internal scratch']
  %s0 = inlined_call_operand.vmem [shape: f32[8,32], index: 0, kind: input, shape index: {}]
  %s1 = inlined_call_operand.vmem [shape: f32[32,8], index: 1, kind: input, shape index: {}]
  %s2 = inlined_call_operand.hbm [shape: f32[8,8], index: 2, kind: output, shape index: {}]
  %s3 = sld [smem:[#allocation0]]
  $region18: #{tpu_custom_call.1} parent=0
    _
  %s5 = ssub.s32 1, %s3
  %s6 = scalar_select 0, %s5, %s3
  $region1: #{tpu_custom_call.1} parent=0
    #allocation2 [shape = 'u8[4096]{0}', space=vmem, size = 0x1000, scoped, tag = 'output window, operand 0, single buffered']
    #allocation3 [shape = 's32[1]{0}', space=sflag, size = 0x4, scoped, tag = 'scoped memory for tpu_custom_call.1']
    %7 = vsyncpa [#allocation3], 0
    // Predicated region
    $region2: #{tpu_custom_call.1} parent=1 // pred_check
      _
    $region3: #{tpu_custom_call.1} parent=1 // pred_check_branch
      %9 = sbr.rel (0) target = $region5
    $region4: #{tpu_custom_call.1} parent=1 // pred_region
      _
    $region5: #{tpu_custom_call.1} parent=1 // pred_fallthru
      _
    // Predicated region
    $region6: #{tpu_custom_call.1} parent=1 // pred_check
      _
    $region7: #{tpu_custom_call.1} parent=1 // pred_check_branch
      %11 = sbr.rel (0) target = $region9
    $region8: #{tpu_custom_call.1} parent=1 // pred_region
      _
    $region9: #{tpu_custom_call.1} parent=1 // pred_fallthru
      _
    %v12 = vld [vmem:[%s0] sm:$0xff]
    %v13 = vld [vmem:[%s1] sm:$0xff]
    %v14 = vld [vmem:[%s1 + $0x8] sm:$0xff]
    %v15 = vld [vmem:[%s1 + $0x10] sm:$0xff]
    %v16 = vld [vmem:[%s1 + $0x18] sm:$0xff]
    %vm17 = vcmask 261120
    %v19 = vsel %vm17, %v12, 0
    %21 = vmatprep.subr.mxu0 0.0
    %v22 = vand.u32 %v13, 4294901760
    %23 = vmatpush1.msra.mxu0 %v22
    %24 = vmatprep.subr.mxu0 0.0
    %v25 = vand.u32 %v14, 4294901760
    %26 = vmatpush1.msra.mxu0 %v25
    %27 = vmatprep.subr.mxu0 0.0
    %v28 = vand.u32 %v15, 4294901760
    %29 = vmatpush1.msra.mxu0 %v28
    %30 = vmatprep.subr.mxu0 0.0
    %v31 = vand.u32 %v16, 4294901760
    %32 = vmatpush1.msra.mxu0 %v31
    %33 = vmatprep.subr.mxu0 0.0
    %34 = vmatpush1.msra.mxu0 0.0
    %35 = vmatprep.subr.mxu0 0.0
    %36 = vmatpush1.msra.mxu0 0.0
    %37 = vmatprep.subr.mxu0 0.0
    %38 = vmatpush1.msra.mxu0 0.0
    %39 = vmatprep.subr.mxu0 0.0
    %40 = vmatpush1.msra.mxu0 0.0
    %41 = vmatprep.subr.mxu0 0.0
    %42 = vmatpush1.msra.mxu0 0.0
    %43 = vmatprep.subr.mxu0 0.0
    %44 = vmatpush1.msra.mxu0 0.0
    %45 = vmatprep.subr.mxu0 0.0
    %46 = vmatpush1.msra.mxu0 0.0
    %47 = vmatprep.subr.mxu0 0.0
    %48 = vmatpush1.msra.mxu0 0.0
    %49 = vmatprep.subr.mxu0 0.0
    %50 = vmatpush1.msra.mxu0 0.0
    %51 = vmatprep.subr.mxu0 0.0
    %52 = vmatpush1.msra.mxu0 0.0
    %53 = vmatprep.subr.mxu0 0.0
    %54 = vmatpush1.msra.mxu0 0.0
    %55 = vmatprep.subr.mxu0 0.0
    %56 = vmatpush1.msra.mxu0 0.0
    %57 = vmatprep.subr.mxu0 0.0
    %58 = vmatpush1.msra.mxu0 0.0
    %59 = vmatprep.subr.mxu0 0.0
    %60 = vmatpush1.msra.mxu0 0.0
    %61 = vmatprep.subr.mxu0 0.0
    %62 = vmatpush1.msra.mxu0 0.0
    %63 = vmatprep.subr.mxu0 0.0
    %64 = vmatpush1.msra.mxu0 0.0
    %65 = vmatprep.subr.mxu0 0.0
    %66 = vmatpush1.msra.mxu0 0.0
    %67 = vmatprep.subr.mxu0 0.0
    %68 = vmatpush1.msra.mxu0 0.0
    %69 = vmatprep.subr.mxu0 0.0
    %70 = vmatpush1.msra.mxu0 0.0
    %71 = vmatprep.subr.mxu0 0.0
    %72 = vmatpush1.msra.mxu0 0.0
    %73 = vmatprep.subr.mxu0 0.0
    %74 = vmatpush1.msra.mxu0 0.0
    %75 = vmatprep.subr.mxu0 0.0
    %76 = vmatpush1.msra.mxu0 0.0
    %77 = vmatprep.subr.mxu0 0.0
    %78 = vmatpush1.msra.mxu0 0.0
    %79 = vmatprep.subr.mxu0 0.0
    %80 = vmatpush1.msra.mxu0 0.0
    %81 = vmatprep.subr.mxu0 0.0
    %82 = vmatpush1.msra.mxu0 0.0
    %83 = vmatprep.subr.mxu0 0.0
    %84 = vmatpush1.msra.mxu0 0.0
    %85 = vmatprep.subr.mxu0 0.0
    %86 = vmatpush1.msra.mxu0 0.0
    %87 = vmatprep.subr.mxu0 0.0
    %88 = vmatpush1.msra.mxu0 0.0
    %89 = vmatprep.mubr.f32.mxu0 0.0
    %v90 = vand.u32 %v19, 4294901760
    %v91 = vsub.f32 %v19, %v90
    %v92 = vand.u32 %v91, 4294901760
    %v93 = vsub.f32 %v91, %v92
    %v94 = vand.u32 %v93, 4294901760
    %95 = vmatmul.mubr.f32.gmra.mrb[0].mxu0 %v94
    %v96 = vpop.f32.mrb[0].mxu0
    %v97 = vadd.f32 0.0, %v96
    %v98 = vpop.f32.mrb[0].mxu0
    %99 = vdwg.mxu0
    %100 = vmatprep.subr.mxu0 0.0
    %v101 = vand.u32 %v13, 4294901760
    %v102 = vsub.f32 %v13, %v101
    %v103 = vand.u32 %v102, 4294901760
    %v104 = vsub.f32 %v102, %v103
    %v105 = vand.u32 %v104, 4294901760
    %106 = vmatpush1.msra.mxu0 %v105
    %107 = vmatprep.subr.mxu0 0.0
    %v108 = vand.u32 %v14, 4294901760
    %v109 = vsub.f32 %v14, %v108
    %v110 = vand.u32 %v109, 4294901760
    %v111 = vsub.f32 %v109, %v110
    %v112 = vand.u32 %v111, 4294901760
    %113 = vmatpush1.msra.mxu0 %v112
    %114 = vmatprep.subr.mxu0 0.0
    %v115 = vand.u32 %v15, 4294901760
    %v116 = vsub.f32 %v15, %v115
    %v117 = vand.u32 %v116, 4294901760
    %v118 = vsub.f32 %v116, %v117
    %v119 = vand.u32 %v118, 4294901760
    %120 = vmatpush1.msra.mxu0 %v119
    %121 = vmatprep.subr.mxu0 0.0
    %v122 = vand.u32 %v16, 4294901760
    %v123 = vsub.f32 %v16, %v122
    %v124 = vand.u32 %v123, 4294901760
    %v125 = vsub.f32 %v123, %v124
    %v126 = vand.u32 %v125, 4294901760
    %127 = vmatpush1.msra.mxu0 %v126
    %128 = vmatprep.subr.mxu0 0.0
    %129 = vmatpush1.msra.mxu0 0.0
    %130 = vmatprep.subr.mxu0 0.0
    %131 = vmatpush1.msra.mxu0 0.0
    %132 = vmatprep.subr.mxu0 0.0
    %133 = vmatpush1.msra.mxu0 0.0
    %134 = vmatprep.subr.mxu0 0.0
    %135 = vmatpush1.msra.mxu0 0.0
    %136 = vmatprep.subr.mxu0 0.0
    %137 = vmatpush1.msra.mxu0 0.0
    %138 = vmatprep.subr.mxu0 0.0
    %139 = vmatpush1.msra.mxu0 0.0
    %140 = vmatprep.subr.mxu0 0.0
    %141 = vmatpush1.msra.mxu0 0.0
    %142 = vmatprep.subr.mxu0 0.0
    %143 = vmatpush1.msra.mxu0 0.0
    %144 = vmatprep.subr.mxu0 0.0
    %145 = vmatpush1.msra.mxu0 0.0
    %146 = vmatprep.subr.mxu0 0.0
    %147 = vmatpush1.msra.mxu0 0.0
    %148 = vmatprep.subr.mxu0 0.0
    %149 = vmatpush1.msra.mxu0 0.0
    %150 = vmatprep.subr.mxu0 0.0
    %151 = vmatpush1.msra.mxu0 0.0
    %152 = vmatprep.subr.mxu0 0.0
    %153 = vmatpush1.msra.mxu0 0.0
    %154 = vmatprep.subr.mxu0 0.0
    %155 = vmatpush1.msra.mxu0 0.0
    %156 = vmatprep.subr.mxu0 0.0
    %157 = vmatpush1.msra.mxu0 0.0
    %158 = vmatprep.subr.mxu0 0.0
    %159 = vmatpush1.msra.mxu0 0.0
    %160 = vmatprep.subr.mxu0 0.0
    %161 = vmatpush1.msra.mxu0 0.0
    %162 = vmatprep.subr.mxu0 0.0
    %163 = vmatpush1.msra.mxu0 0.0
    %164 = vmatprep.subr.mxu0 0.0
    %165 = vmatpush1.msra.mxu0 0.0
    %166 = vmatprep.subr.mxu0 0.0
    %167 = vmatpush1.msra.mxu0 0.0
    %168 = vmatprep.subr.mxu0 0.0
    %169 = vmatpush1.msra.mxu0 0.0
    %170 = vmatprep.subr.mxu0 0.0
    %171 = vmatpush1.msra.mxu0 0.0
    %172 = vmatprep.subr.mxu0 0.0
    %173 = vmatpush1.msra.mxu0 0.0
    %174 = vmatprep.subr.mxu0 0.0
    %175 = vmatpush1.msra.mxu0 0.0
    %176 = vmatprep.subr.mxu0 0.0
    %177 = vmatpush1.msra.mxu0 0.0
    %178 = vmatprep.subr.mxu0 0.0
    %179 = vmatpush1.msra.mxu0 0.0
    %180 = vmatprep.subr.mxu0 0.0
    %181 = vmatpush1.msra.mxu0 0.0
    %182 = vmatprep.subr.mxu0 0.0
    %183 = vmatpush1.msra.mxu0 0.0
    %184 = vmatprep.mubr.f32.mxu0 0.0
    %v185 = vand.u32 %v19, 4294901760
    %186 = vmatmul.mubr.f32.gmra.mrb[0].mxu0 %v185
    %v187 = vpop.f32.mrb[0].mxu0
    %v188 = vadd.f32 %v97, %v187
    %v189 = vpop.f32.mrb[0].mxu0
    %190 = vdwg.mxu0
    %191 = vmatprep.subr.mxu0 0.0
    %v192 = vand.u32 %v13, 4294901760
    %v193 = vsub.f32 %v13, %v192
    %194 = vmatpush1.msra.mxu0 %v193
    %195 = vmatprep.subr.mxu0 0.0
    %v196 = vand.u32 %v14, 4294901760
    %v197 = vsub.f32 %v14, %v196
    %198 = vmatpush1.msra.mxu0 %v197
    %199 = vmatprep.subr.mxu0 0.0
    %v200 = vand.u32 %v15, 4294901760
    %v201 = vsub.f32 %v15, %v200
    %202 = vmatpush1.msra.mxu0 %v201
    %203 = vmatprep.subr.mxu0 0.0
    %v204 = vand.u32 %v16, 4294901760
    %v205 = vsub.f32 %v16, %v204
    %206 = vmatpush1.msra.mxu0 %v205
    %207 = vmatprep.subr.mxu0 0.0
    %208 = vmatpush1.msra.mxu0 0.0
    %209 = vmatprep.subr.mxu0 0.0
    %210 = vmatpush1.msra.mxu0 0.0
    %211 = vmatprep.subr.mxu0 0.0
    %212 = vmatpush1.msra.mxu0 0.0
    %213 = vmatprep.subr.mxu0 0.0
    %214 = vmatpush1.msra.mxu0 0.0
    %215 = vmatprep.subr.mxu0 0.0
    %216 = vmatpush1.msra.mxu0 0.0
    %217 = vmatprep.subr.mxu0 0.0
    %218 = vmatpush1.msra.mxu0 0.0
    %219 = vmatprep.subr.mxu0 0.0
    %220 = vmatpush1.msra.mxu0 0.0
    %221 = vmatprep.subr.mxu0 0.0
    %222 = vmatpush1.msra.mxu0 0.0
    %223 = vmatprep.subr.mxu0 0.0
    %224 = vmatpush1.msra.mxu0 0.0
    %225 = vmatprep.subr.mxu0 0.0
    %226 = vmatpush1.msra.mxu0 0.0
    %227 = vmatprep.subr.mxu0 0.0
    %228 = vmatpush1.msra.mxu0 0.0
    %229 = vmatprep.subr.mxu0 0.0
    %230 = vmatpush1.msra.mxu0 0.0
    %231 = vmatprep.subr.mxu0 0.0
    %232 = vmatpush1.msra.mxu0 0.0
    %233 = vmatprep.subr.mxu0 0.0
    %234 = vmatpush1.msra.mxu0 0.0
    %235 = vmatprep.subr.mxu0 0.0
    %236 = vmatpush1.msra.mxu0 0.0
    %237 = vmatprep.subr.mxu0 0.0
    %238 = vmatpush1.msra.mxu0 0.0
    %239 = vmatprep.subr.mxu0 0.0
    %240 = vmatpush1.msra.mxu0 0.0
    %241 = vmatprep.subr.mxu0 0.0
    %242 = vmatpush1.msra.mxu0 0.0
    %243 = vmatprep.subr.mxu0 0.0
    %244 = vmatpush1.msra.mxu0 0.0
    %245 = vmatprep.subr.mxu0 0.0
    %246 = vmatpush1.msra.mxu0 0.0
    %247 = vmatprep.subr.mxu0 0.0
    %248 = vmatpush1.msra.mxu0 0.0
    %249 = vmatprep.subr.mxu0 0.0
    %250 = vmatpush1.msra.mxu0 0.0
    %251 = vmatprep.subr.mxu0 0.0
    %252 = vmatpush1.msra.mxu0 0.0
    %253 = vmatprep.subr.mxu0 0.0
    %254 = vmatpush1.msra.mxu0 0.0
    %255 = vmatprep.subr.mxu0 0.0
    %256 = vmatpush1.msra.mxu0 0.0
    %257 = vmatprep.subr.mxu0 0.0
    %258 = vmatpush1.msra.mxu0 0.0
    %259 = vmatprep.subr.mxu0 0.0
    %260 = vmatpush1.msra.mxu0 0.0
    %261 = vmatprep.subr.mxu0 0.0
    %262 = vmatpush1.msra.mxu0 0.0
    %263 = vmatprep.mubr.f32.mxu0 0.0
    %v264 = vand.u32 %v19, 4294901760
    %v265 = vsub.f32 %v19, %v264
    %266 = vmatmul.mubr.f32.gmra.mrb[0].mxu0 %v265
    %v267 = vpop.f32.mrb[0].mxu0
    %v268 = vadd.f32 %v188, %v267
    %v269 = vpop.f32.mrb[0].mxu0
    %270 = vdwg.mxu0
    %271 = vmatprep.subr.mxu0 0.0
    %v272 = vand.u32 %v13, 4294901760
    %273 = vmatpush1.msra.mxu0 %v272
    %274 = vmatprep.subr.mxu0 0.0
    %v275 = vand.u32 %v14, 4294901760
    %276 = vmatpush1.msra.mxu0 %v275
    %277 = vmatprep.subr.mxu0 0.0
    %v278 = vand.u32 %v15, 4294901760
    %279 = vmatpush1.msra.mxu0 %v278
    %280 = vmatprep.subr.mxu0 0.0
    %v281 = vand.u32 %v16, 4294901760
    %282 = vmatpush1.msra.mxu0 %v281
    %283 = vmatprep.subr.mxu0 0.0
    %284 = vmatpush1.msra.mxu0 0.0
    %285 = vmatprep.subr.mxu0 0.0
    %286 = vmatpush1.msra.mxu0 0.0
    %287 = vmatprep.subr.mxu0 0.0
    %288 = vmatpush1.msra.mxu0 0.0
    %289 = vmatprep.subr.mxu0 0.0
    %290 = vmatpush1.msra.mxu0 0.0
    %291 = vmatprep.subr.mxu0 0.0
    %292 = vmatpush1.msra.mxu0 0.0
    %293 = vmatprep.subr.mxu0 0.0
    %294 = vmatpush1.msra.mxu0 0.0
    %295 = vmatprep.subr.mxu0 0.0
    %296 = vmatpush1.msra.mxu0 0.0
    %297 = vmatprep.subr.mxu0 0.0
    %298 = vmatpush1.msra.mxu0 0.0
    %299 = vmatprep.subr.mxu0 0.0
    %300 = vmatpush1.msra.mxu0 0.0
    %301 = vmatprep.subr.mxu0 0.0
    %302 = vmatpush1.msra.mxu0 0.0
    %303 = vmatprep.subr.mxu0 0.0
    %304 = vmatpush1.msra.mxu0 0.0
    %305 = vmatprep.subr.mxu0 0.0
    %306 = vmatpush1.msra.mxu0 0.0
    %307 = vmatprep.subr.mxu0 0.0
    %308 = vmatpush1.msra.mxu0 0.0
    %309 = vmatprep.subr.mxu0 0.0
    %310 = vmatpush1.msra.mxu0 0.0
    %311 = vmatprep.subr.mxu0 0.0
    %312 = vmatpush1.msra.mxu0 0.0
    %313 = vmatprep.subr.mxu0 0.0
    %314 = vmatpush1.msra.mxu0 0.0
    %315 = vmatprep.subr.mxu0 0.0
    %316 = vmatpush1.msra.mxu0 0.0
    %317 = vmatprep.subr.mxu0 0.0
    %318 = vmatpush1.msra.mxu0 0.0
    %319 = vmatprep.subr.mxu0 0.0
    %320 = vmatpush1.msra.mxu0 0.0
    %321 = vmatprep.subr.mxu0 0.0
    %322 = vmatpush1.msra.mxu0 0.0
    %323 = vmatprep.subr.mxu0 0.0
    %324 = vmatpush1.msra.mxu0 0.0
    %325 = vmatprep.subr.mxu0 0.0
    %326 = vmatpush1.msra.mxu0 0.0
    %327 = vmatprep.subr.mxu0 0.0
    %328 = vmatpush1.msra.mxu0 0.0
    %329 = vmatprep.subr.mxu0 0.0
    %330 = vmatpush1.msra.mxu0 0.0
    %331 = vmatprep.subr.mxu0 0.0
    %332 = vmatpush1.msra.mxu0 0.0
    %333 = vmatprep.subr.mxu0 0.0
    %334 = vmatpush1.msra.mxu0 0.0
    %335 = vmatprep.subr.mxu0 0.0
    %336 = vmatpush1.msra.mxu0 0.0
    %337 = vmatprep.subr.mxu0 0.0
    %338 = vmatpush1.msra.mxu0 0.0
    %339 = vmatprep.mubr.f32.mxu0 0.0
    %v340 = vand.u32 %v19, 4294901760
    %v341 = vsub.f32 %v19, %v340
    %v342 = vand.u32 %v341, 4294901760
    %343 = vmatmul.mubr.f32.gmra.mrb[0].mxu0 %v342
    %v344 = vpop.f32.mrb[0].mxu0
    %v345 = vadd.f32 %v268, %v344
    %v346 = vpop.f32.mrb[0].mxu0
    %347 = vdwg.mxu0
    %348 = vmatprep.subr.mxu0 0.0
    %v349 = vand.u32 %v13, 4294901760
    %v350 = vsub.f32 %v13, %v349
    %v351 = vand.u32 %v350, 4294901760
    %352 = vmatpush1.msra.mxu0 %v351
    %353 = vmatprep.subr.mxu0 0.0
    %v354 = vand.u32 %v14, 4294901760
    %v355 = vsub.f32 %v14, %v354
    %v356 = vand.u32 %v355, 4294901760
    %357 = vmatpush1.msra.mxu0 %v356
    %358 = vmatprep.subr.mxu0 0.0
    %v359 = vand.u32 %v15, 4294901760
    %v360 = vsub.f32 %v15, %v359
    %v361 = vand.u32 %v360, 4294901760
    %362 = vmatpush1.msra.mxu0 %v361
    %363 = vmatprep.subr.mxu0 0.0
    %v364 = vand.u32 %v16, 4294901760
    %v365 = vsub.f32 %v16, %v364
    %v366 = vand.u32 %v365, 4294901760
    %367 = vmatpush1.msra.mxu0 %v366
    %368 = vmatprep.subr.mxu0 0.0
    %369 = vmatpush1.msra.mxu0 0.0
    %370 = vmatprep.subr.mxu0 0.0
    %371 = vmatpush1.msra.mxu0 0.0
    %372 = vmatprep.subr.mxu0 0.0
    %373 = vmatpush1.msra.mxu0 0.0
    %374 = vmatprep.subr.mxu0 0.0
    %375 = vmatpush1.msra.mxu0 0.0
    %376 = vmatprep.subr.mxu0 0.0
    %377 = vmatpush1.msra.mxu0 0.0
    %378 = vmatprep.subr.mxu0 0.0
    %379 = vmatpush1.msra.mxu0 0.0
    %380 = vmatprep.subr.mxu0 0.0
    %381 = vmatpush1.msra.mxu0 0.0
    %382 = vmatprep.subr.mxu0 0.0
    %383 = vmatpush1.msra.mxu0 0.0
    %384 = vmatprep.subr.mxu0 0.0
    %385 = vmatpush1.msra.mxu0 0.0
    %386 = vmatprep.subr.mxu0 0.0
    %387 = vmatpush1.msra.mxu0 0.0
    %388 = vmatprep.subr.mxu0 0.0
    %389 = vmatpush1.msra.mxu0 0.0
    %390 = vmatprep.subr.mxu0 0.0
    %391 = vmatpush1.msra.mxu0 0.0
    %392 = vmatprep.subr.mxu0 0.0
    %393 = vmatpush1.msra.mxu0 0.0
    %394 = vmatprep.subr.mxu0 0.0
    %395 = vmatpush1.msra.mxu0 0.0
    %396 = vmatprep.subr.mxu0 0.0
    %397 = vmatpush1.msra.mxu0 0.0
    %398 = vmatprep.subr.mxu0 0.0
    %399 = vmatpush1.msra.mxu0 0.0
    %400 = vmatprep.subr.mxu0 0.0
    %401 = vmatpush1.msra.mxu0 0.0
    %402 = vmatprep.subr.mxu0 0.0
    %403 = vmatpush1.msra.mxu0 0.0
    %404 = vmatprep.subr.mxu0 0.0
    %405 = vmatpush1.msra.mxu0 0.0
    %406 = vmatprep.subr.mxu0 0.0
    %407 = vmatpush1.msra.mxu0 0.0
    %408 = vmatprep.subr.mxu0 0.0
    %409 = vmatpush1.msra.mxu0 0.0
    %410 = vmatprep.subr.mxu0 0.0
    %411 = vmatpush1.msra.mxu0 0.0
    %412 = vmatprep.subr.mxu0 0.0
    %413 = vmatpush1.msra.mxu0 0.0
    %414 = vmatprep.subr.mxu0 0.0
    %415 = vmatpush1.msra.mxu0 0.0
    %416 = vmatprep.subr.mxu0 0.0
    %417 = vmatpush1.msra.mxu0 0.0
    %418 = vmatprep.subr.mxu0 0.0
    %419 = vmatpush1.msra.mxu0 0.0
    %420 = vmatprep.subr.mxu0 0.0
    %421 = vmatpush1.msra.mxu0 0.0
    %422 = vmatprep.subr.mxu0 0.0
    %423 = vmatpush1.msra.mxu0 0.0
    %424 = vmatprep.mubr.f32.mxu0 0.0
    %v425 = vand.u32 %v19, 4294901760
    %426 = vmatmul.mubr.f32.gmra.mrb[0].mxu0 %v425
    %v427 = vpop.f32.mrb[0].mxu0
    %v428 = vadd.f32 %v345, %v427
    %v429 = vpop.f32.mrb[0].mxu0
    %430 = vdwg.mxu0
    %431 = vmatprep.subr.mxu0 0.0
    %v432 = vand.u32 %v13, 4294901760
    %433 = vmatpush1.msra.mxu0 %v432
    %434 = vmatprep.subr.mxu0 0.0
    %v435 = vand.u32 %v14, 4294901760
    %436 = vmatpush1.msra.mxu0 %v435
    %437 = vmatprep.subr.mxu0 0.0
    %v438 = vand.u32 %v15, 4294901760
    %439 = vmatpush1.msra.mxu0 %v438
    %440 = vmatprep.subr.mxu0 0.0
    %v441 = vand.u32 %v16, 4294901760
    %442 = vmatpush1.msra.mxu0 %v441
    %443 = vmatprep.subr.mxu0 0.0
    %444 = vmatpush1.msra.mxu0 0.0
    %445 = vmatprep.subr.mxu0 0.0
    %446 = vmatpush1.msra.mxu0 0.0
    %447 = vmatprep.subr.mxu0 0.0
    %448 = vmatpush1.msra.mxu0 0.0
    %449 = vmatprep.subr.mxu0 0.0
    %450 = vmatpush1.msra.mxu0 0.0
    %451 = vmatprep.subr.mxu0 0.0
    %452 = vmatpush1.msra.mxu0 0.0
    %453 = vmatprep.subr.mxu0 0.0
    %454 = vmatpush1.msra.mxu0 0.0
    %455 = vmatprep.subr.mxu0 0.0
    %456 = vmatpush1.msra.mxu0 0.0
    %457 = vmatprep.subr.mxu0 0.0
    %458 = vmatpush1.msra.mxu0 0.0
    %459 = vmatprep.subr.mxu0 0.0
    %460 = vmatpush1.msra.mxu0 0.0
    %461 = vmatprep.subr.mxu0 0.0
    %462 = vmatpush1.msra.mxu0 0.0
    %463 = vmatprep.subr.mxu0 0.0
    %464 = vmatpush1.msra.mxu0 0.0
    %465 = vmatprep.subr.mxu0 0.0
    %466 = vmatpush1.msra.mxu0 0.0
    %467 = vmatprep.subr.mxu0 0.0
    %468 = vmatpush1.msra.mxu0 0.0
    %469 = vmatprep.subr.mxu0 0.0
    %470 = vmatpush1.msra.mxu0 0.0
    %471 = vmatprep.subr.mxu0 0.0
    %472 = vmatpush1.msra.mxu0 0.0
    %473 = vmatprep.subr.mxu0 0.0
    %474 = vmatpush1.msra.mxu0 0.0
    %475 = vmatprep.subr.mxu0 0.0
    %476 = vmatpush1.msra.mxu0 0.0
    %477 = vmatprep.subr.mxu0 0.0
    %478 = vmatpush1.msra.mxu0 0.0
    %479 = vmatprep.subr.mxu0 0.0
    %480 = vmatpush1.msra.mxu0 0.0
    %481 = vmatprep.subr.mxu0 0.0
    %482 = vmatpush1.msra.mxu0 0.0
    %483 = vmatprep.subr.mxu0 0.0
    %484 = vmatpush1.msra.mxu0 0.0
    %485 = vmatprep.subr.mxu0 0.0
    %486 = vmatpush1.msra.mxu0 0.0
    %487 = vmatprep.subr.mxu0 0.0
    %488 = vmatpush1.msra.mxu0 0.0
    %489 = vmatprep.subr.mxu0 0.0
    %490 = vmatpush1.msra.mxu0 0.0
    %491 = vmatprep.subr.mxu0 0.0
    %492 = vmatpush1.msra.mxu0 0.0
    %493 = vmatprep.subr.mxu0 0.0
    %494 = vmatpush1.msra.mxu0 0.0
    %495 = vmatprep.subr.mxu0 0.0
    %496 = vmatpush1.msra.mxu0 0.0
    %497 = vmatprep.subr.mxu0 0.0
    %498 = vmatpush1.msra.mxu0 0.0
    %499 = vmatprep.mubr.f32.mxu0 0.0
    %v500 = vand.u32 %v19, 4294901760
    %501 = vmatmul.mubr.f32.gmra.mrb[0].mxu0 %v500
    %v502 = vpop.f32.mrb[0].mxu0
    %v503 = vadd.f32 %v428, %v502
    %v504 = vpop.f32.mrb[0].mxu0
    %505 = vdwg.mxu0
    %v506 = vmul.f32 %v503, 0.25
    %vm507 = vcmask 64512
    %508 = vst.msk [vmem:[#allocation2] sm:$0xff] %vm507, %v506
    // Predicated region
    $region10: #{tpu_custom_call.1} parent=1 // pred_check
      _
    $region11: #{tpu_custom_call.1} parent=1 // pred_check_branch
      %510 = sbr.rel (0) target = $region13
    $region12: #{tpu_custom_call.1} parent=1 // pred_region
      %s512 = ssub.s32 128, 128
      %513 = vsyncadd [#allocation3], %s512
      %s515 = sshll.u32 [#allocation2], 4
      %s516 = int_to_ptr.vmem [resolvable:$true] %s515
      %518 = dma.vmem_to_hbm [thread:$0]  %s516, 128, %s2, [#allocation3]
    $region13: #{tpu_custom_call.1} parent=1 // pred_fallthru
      _
    // Predicated region
    $region14: #{tpu_custom_call.1} parent=1 // pred_check
      _
    $region15: #{tpu_custom_call.1} parent=1 // pred_check_branch
      %520 = sbr.rel (0) target = $region17
    $region16: #{tpu_custom_call.1} parent=1 // pred_region
      %521 = dma.done [#allocation3], 128
    $region17: #{tpu_custom_call.1} parent=1 // pred_fallthru
      _
    %522 = vsyncpa [#allocation3], 1

</llo_original>
